<compile_context>
chip_gen: v6e
topology: v6e:2x2x1
jax: 0.10.0
libtpu: 0.0.40
codegen_flags: <defaults>
</compile_context>

<pallas_src>
import jax
import jax.numpy as jnp
from jax.experimental import pallas as pl
from jax.experimental.pallas import tpu as pltpu


def _pick_tile(n, candidates=(512, 256, 128)):
    for t in candidates:
        if n % t == 0:
            return t
    return n  # full extent (allowed: block dim == array dim)


def _qkv_proj_kernel(x_ref, wqkv_ref, bqkv_ref, q_ref, k_ref, v_ref):
    """(TM, D) x (D, 3D) fused projection; writes q/k/v tiles in bf16."""
    D = q_ref.shape[-1]
    x = x_ref[...].astype(jnp.bfloat16)
    qkv = jnp.dot(x, wqkv_ref[...], preferred_element_type=jnp.float32) + bqkv_ref[...]
    q_ref[...] = qkv[:, :D].astype(q_ref.dtype)
    k_ref[...] = qkv[:, D:2 * D].astype(k_ref.dtype)
    v_ref[...] = qkv[:, 2 * D:].astype(v_ref.dtype)


def _attn_ffn_kernel(q_ref, k_ref, v_ref, x_ref,
                     wo_ref, bo_ref, g1_ref, be1_ref,
                     w1_ref, b1_ref, w2_ref, b2_ref,
                     g2_ref, be2_ref, o_ref):
    f32 = jnp.float32
    bf16 = jnp.bfloat16

    q = q_ref[0]          # (H, TQ, hd) bf16
    k = k_ref[0]          # (H, S,  hd) bf16
    v = v_ref[0]          # (H, S,  hd) bf16
    x = x_ref[0]          # (TQ, D)     f32
    hd = q.shape[-1]
    scale = 1.0 / (hd ** 0.5)

    # Scores: head axis is the MXU batch dim; contraction over hd (no K transpose).
    s = jnp.einsum("hqd,hkd->hqk", q, k, preferred_element_type=f32) * scale
    m = jnp.max(s, axis=-1, keepdims=True)
    p = jnp.exp(s - m)
    p = p * pl.reciprocal(jnp.sum(p, axis=-1, keepdims=True), approx=True)

    # Per-head context; att @ Wo == sum_h ctx_h @ Wo[h*hd:(h+1)*hd, :], which replaces
    # the lane-dim concatenate with a cheap reduction over the leading head axis.
    ctx = jnp.einsum("hqk,hkd->hqd", p.astype(bf16), v,
                     preferred_element_type=f32)                      # (H, TQ, hd)
    att_h = jnp.einsum("hqd,hdn->hqn", ctx.astype(bf16), wo_ref[...],
                       preferred_element_type=f32)                    # (H, TQ, D)
    att = jnp.sum(att_h, axis=0) + bo_ref[0]                          # (TQ, D)

    # Residual + LayerNorm1 (dropout == identity in eval mode).
    y = x + att
    mu = jnp.mean(y, axis=-1, keepdims=True)
    var = jnp.mean((y - mu) ** 2, axis=-1, keepdims=True)
    y = (y - mu) * jax.lax.rsqrt(var + 1e-5) * g1_ref[0] + be1_ref[0]

    # Feed-forward: Linear -> ReLU -> Linear (bf16 operands, f32 accumulate).
    hmid = jnp.dot(y.astype(bf16), w1_ref[...], preferred_element_type=f32) + b1_ref[0]
    hmid = jnp.maximum(hmid, 0.0)
    ff = jnp.dot(hmid.astype(bf16), w2_ref[...], preferred_element_type=f32) + b2_ref[0]

    # Residual + LayerNorm2.
    z = y + ff
    mu2 = jnp.mean(z, axis=-1, keepdims=True)
    var2 = jnp.mean((z - mu2) ** 2, axis=-1, keepdims=True)
    z = (z - mu2) * jax.lax.rsqrt(var2 + 1e-5) * g2_ref[0] + be2_ref[0]

    o_ref[0] = z.astype(o_ref.dtype)


def transformer_block(x, params, *, num_heads):
    """x: (B, S, D) float32. params: dict of f32 weights (see init_params)."""
    B, S, D = x.shape
    assert D % num_heads == 0, "d_model must be divisible by num_heads"
    hd = D // num_heads
    d_ff = params["w1"].shape[1]
    bf16 = jnp.bfloat16
    BS = B * S

    vmem_spec = pl.BlockSpec(memory_space=pltpu.MemorySpace.VMEM)  # whole array, single copy

    # ---------------- Kernel 1: fused QKV projection over (B*S, D) rows ----------------
    w_qkv = jnp.concatenate([params["wq"], params["wk"], params["wv"]], axis=1).astype(bf16)
    b_qkv = jnp.concatenate([params["bq"], params["bk"], params["bv"]], axis=1)  # (1, 3D) f32

    TM = _pick_tile(BS)
    x2d = x.reshape(BS, D)

    est1 = (2 * D * 3 * D + 4 * 3 * D          # resident weights / bias
            + 2 * 2 * TM * D * 4               # double-buffered x tiles (f32)
            + 3 * 2 * TM * D * 2               # double-buffered q/k/v out tiles (bf16)
            + TM * 3 * D * 4)                  # f32 accumulator
    vmem1 = min(64 << 20, max(32 << 20, 2 * est1))

    row_spec = pl.BlockSpec((TM, D), lambda i: (i, 0))
    q2d, k2d, v2d = pl.pallas_call(
        _qkv_proj_kernel,
        out_shape=tuple(jax.ShapeDtypeStruct((BS, D), bf16) for _ in range(3)),
        grid_spec=pltpu.PrefetchScalarGridSpec(
            num_scalar_prefetch=0,
            grid=(BS // TM,),
            in_specs=[row_spec, vmem_spec, vmem_spec],
            out_specs=(row_spec, row_spec, row_spec),
        ),
        compiler_params=pltpu.CompilerParams(
            dimension_semantics=("parallel",),
            vmem_limit_bytes=vmem1,
        ),
    )(x2d, w_qkv, b_qkv)

    # Head-major layout (B, H, S, hd): heads become a leading batch axis in kernel 2,
    # so the kernel needs no reshapes / transposes / lane-dim concatenates.
    def split_heads(t):
        return t.reshape(B, S, num_heads, hd).transpose(0, 2, 1, 3)

    q4, k4, v4 = split_heads(q2d), split_heads(k2d), split_heads(v2d)

    # Wo sliced per head on the host: (D, D) -> (H, hd, D).
    wo3 = params["wo"].reshape(num_heads, hd, D).astype(bf16)

    # ---------------- Kernel 2: attention + out-proj + LN1 + FFN + LN2 -----------------
    TQ = _pick_tile(S)

    est2 = (2 * (D * D + D * d_ff + d_ff * D)          # bf16 weights
            + 4 * (6 * D + d_ff)                        # f32 biases / LN params
            + 2 * 2 * num_heads * TQ * hd * 2           # q tiles (double-buffered)
            + 2 * 2 * 2 * num_heads * S * hd * 2        # k, v (double-buffered)
            + 2 * 2 * 2 * TQ * D * 4                    # x tile + out tile
            + 2 * num_heads * TQ * S * 4                # scores + probs
            + num_heads * TQ * (hd + D) * 4             # ctx + per-head projection
            + TQ * (4 * D + d_ff) * 4)                  # y/z/ff/hmid temporaries
    vmem2 = min(64 << 20, max(32 << 20, 2 * est2))

    qtile_spec = pl.BlockSpec((1, num_heads, TQ, hd), lambda b, qi: (b, 0, qi, 0))
    kv_spec = pl.BlockSpec((1, num_heads, S, hd), lambda b, qi: (b, 0, 0, 0))
    xtile_spec = pl.BlockSpec((1, TQ, D), lambda b, qi: (b, qi, 0))

    return pl.pallas_call(
        _attn_ffn_kernel,
        out_shape=jax.ShapeDtypeStruct((B, S, D), x.dtype),
        grid_spec=pltpu.PrefetchScalarGridSpec(
            num_scalar_prefetch=0,
            grid=(B, S // TQ),
            in_specs=[
                qtile_spec, kv_spec, kv_spec, xtile_spec,
                vmem_spec, vmem_spec,        # wo3, bo
                vmem_spec, vmem_spec,        # g1, be1
                vmem_spec, vmem_spec,        # w1, b1
                vmem_spec, vmem_spec,        # w2, b2
                vmem_spec, vmem_spec,        # g2, be2
            ],
            out_specs=xtile_spec,
        ),
        compiler_params=pltpu.CompilerParams(
            dimension_semantics=("parallel", "parallel"),
            vmem_limit_bytes=vmem2,
        ),
    )(q4, k4, v4, x,
      wo3, params["bo"], params["g1"], params["be1"],
      params["w1"].astype(bf16), params["b1"],
      params["w2"].astype(bf16), params["b2"],
      params["g2"], params["be2"])


def init_params(key, d_model, d_ff):
    ks = jax.random.split(key, 10)
    sd = d_model ** -0.5
    f32 = jnp.float32
    return {
        "wq": jax.random.normal(ks[0], (d_model, d_model), f32) * sd,
        "bq": jax.random.normal(ks[1], (1, d_model), f32) * 0.02,
        "wk": jax.random.normal(ks[2], (d_model, d_model), f32) * sd,
        "bk": jax.random.normal(ks[3], (1, d_model), f32) * 0.02,
        "wv": jax.random.normal(ks[4], (d_model, d_model), f32) * sd,
        "bv": jax.random.normal(ks[5], (1, d_model), f32) * 0.02,
        "wo": jax.random.normal(ks[6], (d_model, d_model), f32) * sd,
        "bo": jax.random.normal(ks[7], (1, d_model), f32) * 0.02,
        "g1": jnp.ones((1, d_model), f32),
        "be1": jnp.zeros((1, d_model), f32),
        "w1": jax.random.normal(ks[8], (d_model, d_ff), f32) * sd,
        "b1": jnp.zeros((1, d_ff), f32),
        "w2": jax.random.normal(ks[9], (d_ff, d_model), f32) * (d_ff ** -0.5),
        "b2": jnp.zeros((1, d_model), f32),
        "g2": jnp.ones((1, d_model), f32),
        "be2": jnp.zeros((1, d_model), f32),
    }


def reference_block(x, params, *, num_heads):
    """Pure-JAX f32 reference (mirrors PyTorch forward in eval mode)."""
    B, S, D = x.shape
    hd = D // num_heads

    def ln(v, g, b):
        mu = jnp.mean(v, axis=-1, keepdims=True)
        var = jnp.mean((v - mu) ** 2, axis=-1, keepdims=True)
        return (v - mu) / jnp.sqrt(var + 1e-5) * g + b

    q = x @ params["wq"] + params["bq"][0]
    k = x @ params["wk"] + params["bk"][0]
    v = x @ params["wv"] + params["bv"][0]
    q = q.reshape(B, S, num_heads, hd).transpose(0, 2, 1, 3)
    k = k.reshape(B, S, num_heads, hd).transpose(0, 2, 1, 3)
    v = v.reshape(B, S, num_heads, hd).transpose(0, 2, 1, 3)
    s = jnp.einsum("bhqd,bhkd->bhqk", q, k) / jnp.sqrt(jnp.float32(hd))
    p = jax.nn.softmax(s, axis=-1)
    att = jnp.einsum("bhqk,bhkd->bhqd", p, v).transpose(0, 2, 1, 3).reshape(B, S, D)
    att = att @ params["wo"] + params["bo"][0]

    y = ln(x + att, params["g1"][0], params["be1"][0])
    ff = jnp.maximum(y @ params["w1"] + params["b1"][0], 0.0) @ params["w2"] + params["b2"][0]
    return ln(y + ff, params["g2"][0], params["be2"][0])


if __name__ == "__main__":
    B, S, D, H, DFF = 2, 8, 32, 4, 64
    key = jax.random.PRNGKey(0)
    kx, kp = jax.random.split(key)
    x = jax.random.normal(kx, (B, S, D), jnp.float32)
    params = init_params(kp, D, DFF)

    out = transformer_block(x, params, num_heads=H)
    out = jax.block_until_ready(out)

    ref = reference_block(x, params, num_heads=H)
    assert out.shape == (B, S, D)
    # bf16 MXU operands (f32 accumulation) vs. pure-f32 reference -> loose tolerance.
    max_err = float(jnp.max(jnp.abs(out - ref)))
    assert max_err < 1e-1, f"mismatch vs reference: max abs err {max_err}"
    print("KERNEL_OK")
</pallas_src>

<mosaic_0001>
module attributes {stable_mosaic.version = 11 : i64} {
  func.func @_qkv_proj_kernel(%arg0: i32, %arg1: memref<16x32xf32, #tpu.memory_space<vmem>>, %arg2: memref<32x96xbf16, #tpu.memory_space<vmem>>, %arg3: memref<1x96xf32, #tpu.memory_space<vmem>>, %arg4: memref<16x32xbf16, #tpu.memory_space<vmem>>, %arg5: memref<16x32xbf16, #tpu.memory_space<vmem>>, %arg6: memref<16x32xbf16, #tpu.memory_space<vmem>>) attributes {dimension_semantics = [#tpu.dimension_semantics<parallel>], iteration_bounds = array<i64: 1>, scalar_prefetch = 0 : i64, scratch_operands = 0 : i64, tpu.core_type = #tpu.core_type<tc>, window_params = [{transform_indices = @transform_0, window_bounds = array<i64: 16, 32>}, {pipeline_mode = #tpu.pipeline_mode<synchronous>, transform_indices = @transform_1, window_bounds = array<i64: 32, 96>}, {pipeline_mode = #tpu.pipeline_mode<synchronous>, transform_indices = @transform_2, window_bounds = array<i64: 1, 96>}, {transform_indices = @transform_3, window_bounds = array<i64: 16, 32>}, {transform_indices = @transform_4, window_bounds = array<i64: 16, 32>}, {transform_indices = @transform_5, window_bounds = array<i64: 16, 32>}]} {
    %c0 = arith.constant 0 : index
    %c0_0 = arith.constant 0 : index
    %0 = vector.load %arg1[%c0, %c0_0] : memref<16x32xf32, #tpu.memory_space<vmem>>, vector<16x32xf32>
    %1 = arith.truncf %0 : vector<16x32xf32> to vector<16x32xbf16>
    %c0_1 = arith.constant 0 : index
    %c0_2 = arith.constant 0 : index
    %2 = vector.load %arg2[%c0_1, %c0_2] : memref<32x96xbf16, #tpu.memory_space<vmem>>, vector<32x96xbf16>
    %cst = arith.constant dense<0.000000e+00> : vector<16x96xf32>
    %3 = tpu.matmul %1, %2, %cst {dimension_numbers = #tpu.dot_dimension_numbers<[1], [0], [0], [1], [0, 0, 1, 1], [], []>} : vector<16x32xbf16>, vector<32x96xbf16>, vector<16x96xf32> -> vector<16x96xf32>
    %c0_3 = arith.constant 0 : index
    %c0_4 = arith.constant 0 : index
    %4 = vector.load %arg3[%c0_3, %c0_4] : memref<1x96xf32, #tpu.memory_space<vmem>>, vector<1x96xf32>
    %5 = vector.broadcast %4 : vector<1x96xf32> to vector<16x96xf32>
    %6 = arith.addf %3, %5 : vector<16x96xf32>
    %7 = vector.extract_strided_slice %6 {offsets = [0, 0], sizes = [16, 32], strides = [1, 1]} : vector<16x96xf32> to vector<16x32xf32>
    %8 = arith.truncf %7 : vector<16x32xf32> to vector<16x32xbf16>
    %c0_5 = arith.constant 0 : index
    %c0_6 = arith.constant 0 : index
    %9 = vector.load %arg4[%c0_5, %c0_6] : memref<16x32xbf16, #tpu.memory_space<vmem>>, vector<16x32xbf16>
    tpu.vector_store %arg4[%c0_5, %c0_6], %8 {strides = array<i32>} : memref<16x32xbf16, #tpu.memory_space<vmem>>, vector<16x32xbf16>,
    %10 = vector.extract_strided_slice %6 {offsets = [0, 32], sizes = [16, 32], strides = [1, 1]} : vector<16x96xf32> to vector<16x32xf32>
    %11 = arith.truncf %10 : vector<16x32xf32> to vector<16x32xbf16>
    %c0_7 = arith.constant 0 : index
    %c0_8 = arith.constant 0 : index
    %12 = vector.load %arg5[%c0_7, %c0_8] : memref<16x32xbf16, #tpu.memory_space<vmem>>, vector<16x32xbf16>
    tpu.vector_store %arg5[%c0_7, %c0_8], %11 {strides = array<i32>} : memref<16x32xbf16, #tpu.memory_space<vmem>>, vector<16x32xbf16>,
    %13 = vector.extract_strided_slice %6 {offsets = [0, 64], sizes = [16, 32], strides = [1, 1]} : vector<16x96xf32> to vector<16x32xf32>
    %14 = arith.truncf %13 : vector<16x32xf32> to vector<16x32xbf16>
    %c0_9 = arith.constant 0 : index
    %c0_10 = arith.constant 0 : index
    %15 = vector.load %arg6[%c0_9, %c0_10] : memref<16x32xbf16, #tpu.memory_space<vmem>>, vector<16x32xbf16>
    tpu.vector_store %arg6[%c0_9, %c0_10], %14 {strides = array<i32>} : memref<16x32xbf16, #tpu.memory_space<vmem>>, vector<16x32xbf16>,
    return
  }
  func.func @transform_0(%arg0: i32) -> (i32, i32) {
    %c0_i32 = arith.constant 0 : i32
    %c0_i32_0 = arith.constant 0 : i32
    return %arg0, %c0_i32 : i32, i32
  }
  func.func @transform_1(%arg0: i32) -> (i32, i32) {
    %c0_i32 = arith.constant 0 : i32
    %c0_i32_0 = arith.constant 0 : i32
    %c0_i32_1 = arith.constant 0 : i32
    return %c0_i32, %c0_i32_0 : i32, i32
  }
  func.func @transform_2(%arg0: i32) -> (i32, i32) {
    %c0_i32 = arith.constant 0 : i32
    %c0_i32_0 = arith.constant 0 : i32
    %c0_i32_1 = arith.constant 0 : i32
    return %c0_i32, %c0_i32_0 : i32, i32
  }
  func.func @transform_3(%arg0: i32) -> (i32, i32) {
    %c0_i32 = arith.constant 0 : i32
    %c0_i32_0 = arith.constant 0 : i32
    return %arg0, %c0_i32 : i32, i32
  }
  func.func @transform_4(%arg0: i32) -> (i32, i32) {
    %c0_i32 = arith.constant 0 : i32
    %c0_i32_0 = arith.constant 0 : i32
    return %arg0, %c0_i32 : i32, i32
  }
  func.func @transform_5(%arg0: i32) -> (i32, i32) {
    %c0_i32 = arith.constant 0 : i32
    %c0_i32_0 = arith.constant 0 : i32
    return %arg0, %c0_i32 : i32, i32
  }
}

</mosaic_0001>

<llo_original>
// kernel: tpu_custom_call.1
$region0: #{tpu_custom_call.1}
  #allocation0 [shape = 'u32[]', space=smem, size = 0x4, offset = 0x4, fixed_abs, tag = 'smem constant byte address 0x4 - core index']
  #allocation1 [shape = 'u32[144,128]{1,0:T(1,128)}', space=vmem, size = 0x12000, scoped, tag = 'internal scratch']
  %s0 = inlined_call_operand.hbm [shape: f32[16,32], index: 0, kind: input, shape index: {}]
  %s1 = inlined_call_operand.hbm [shape: bf16[32,96], index: 1, kind: input, shape index: {}]
  %s2 = inlined_call_operand.vmem [shape: f32[1,96], index: 2, kind: input, shape index: {}]
  %s3 = inlined_call_operand.hbm [shape: bf16[16,32], index: 3, kind: output, shape index: {0}]
  %s4 = inlined_call_operand.hbm [shape: bf16[16,32], index: 4, kind: output, shape index: {1}]
  %s5 = inlined_call_operand.hbm [shape: bf16[16,32], index: 5, kind: output, shape index: {2}]
  %6 = xla_tuple %s3, %s4, %s5
  %s7 = sld [smem:[#allocation0]]
  $region46: #{tpu_custom_call.1} parent=0
    _
  %s9 = ssub.s32 1, %s7
  %s10 = scalar_select 0, %s9, %s7
  $region1: #{tpu_custom_call.1} parent=0
    #allocation2 [shape = 'u8[8192]{0}', space=vmem, size = 0x2000, scoped, tag = 'input window, operand 0, single buffered']
    #allocation3 [shape = 's32[1]{0}', space=sflag, size = 0x4, scoped, tag = 'scoped memory for tpu_custom_call.1']
    #allocation4 [shape = 's32[1]{0}', space=sflag, size = 0x4, scoped, tag = 'scoped memory for tpu_custom_call.1']
    #allocation5 [shape = 'u8[8192]{0}', space=vmem, size = 0x2000, scoped, tag = 'input window, operand 1, single buffered']
    #allocation6 [shape = 's32[1]{0}', space=sflag, size = 0x4, scoped, tag = 'scoped memory for tpu_custom_call.1']
    #allocation7 [shape = 'u8[4096]{0}', space=vmem, size = 0x1000, scoped, tag = 'output window, operand 0, single buffered']
    #allocation8 [shape = 'u8[4096]{0}', space=vmem, size = 0x1000, scoped, tag = 'output window, operand 1, single buffered']
    #allocation9 [shape = 's32[1]{0}', space=sflag, size = 0x4, scoped, tag = 'scoped memory for tpu_custom_call.1']
    #allocation10 [shape = 'u8[4096]{0}', space=vmem, size = 0x1000, scoped, tag = 'output window, operand 2, single buffered']
    %11 = vsyncpa [#allocation3], 0
    %12 = vsyncpa [#allocation6], 0
    %13 = vsyncpa [#allocation4], 0
    %14 = vsyncpa [#allocation9], 0
    // Predicated region
    $region2: #{tpu_custom_call.1} parent=1 // pred_check
      _
    $region3: #{tpu_custom_call.1} parent=1 // pred_check_branch
      %16 = sbr.rel (0) target = $region5
    $region4: #{tpu_custom_call.1} parent=1 // pred_region
      %s18 = ssub.s32 256, 256
      %19 = vsyncadd [#allocation3], %s18
      %s20 = sshll.u32 [#allocation2], 4
      %s21 = int_to_ptr.vmem [resolvable:$true] %s20
      %26 = dma.hbm_to_vmem [thread:$0]  %s0, 256, %s21, [#allocation3], 128, 128, 8
    $region5: #{tpu_custom_call.1} parent=1 // pred_fallthru
      _
    // Predicated region
    $region6: #{tpu_custom_call.1} parent=1 // pred_check
      _
    $region7: #{tpu_custom_call.1} parent=1 // pred_check_branch
      %28 = sbr.rel (0) target = $region9
    $region8: #{tpu_custom_call.1} parent=1 // pred_region
      %s30 = ssub.s32 256, 256
      %31 = vsyncadd [#allocation6], %s30
      %s32 = sshll.u32 [#allocation5], 4
      %s33 = int_to_ptr.vmem [resolvable:$true] %s32
      %38 = dma.hbm_to_vmem [thread:$0]  %s1, 256, %s33, [#allocation6], 64, 64, 4
    $region9: #{tpu_custom_call.1} parent=1 // pred_fallthru
      _
    // Predicated region
    $region10: #{tpu_custom_call.1} parent=1 // pred_check
      _
    $region11: #{tpu_custom_call.1} parent=1 // pred_check_branch
      %40 = sbr.rel (0) target = $region13
    $region12: #{tpu_custom_call.1} parent=1 // pred_region
      _
    $region13: #{tpu_custom_call.1} parent=1 // pred_fallthru
      _
    // Predicated region
    $region14: #{tpu_custom_call.1} parent=1 // pred_check
      _
    $region15: #{tpu_custom_call.1} parent=1 // pred_check_branch
      %42 = sbr.rel (0) target = $region17
    $region16: #{tpu_custom_call.1} parent=1 // pred_region
      %43 = dma.done [#allocation3], 256
    $region17: #{tpu_custom_call.1} parent=1 // pred_fallthru
      _
    // Predicated region
    $region18: #{tpu_custom_call.1} parent=1 // pred_check
      _
    $region19: #{tpu_custom_call.1} parent=1 // pred_check_branch
      %45 = sbr.rel (0) target = $region21
    $region20: #{tpu_custom_call.1} parent=1 // pred_region
      %46 = dma.done [#allocation6], 256
    $region21: #{tpu_custom_call.1} parent=1 // pred_fallthru
      _
    %v48 = vld [vmem:[#allocation2] sm:$0xff]
    %v49 = vld [vmem:[#allocation2 + $0x8] sm:$0xff]
    %v50 = vpack.c.bf16 %v49, %v48
    %v51 = vld [vmem:[#allocation5] sm:$0xf]
    %v52 = vld [vmem:[#allocation5 + $0x4] sm:$0xf]
    %v53 = vld [vmem:[#allocation5 + $0x8] sm:$0xf]
    %v54 = vld [vmem:[#allocation5 + $0xc] sm:$0xf]
    %v55 = vld [vmem:[%s2] sm:$0x1]
    %v57 = vlaneseq
    %v58 = vshrl.u32 %v57, 7
    %v59 = vsub.s32 0, %v58
    %v60 = vrot.slane %v55, %v59
    %v66 = vunpack.c.l.b16 %v51
    %v67 = vunpack.c.l.b16 %v52
    %v68 = vunpack.c.l.b16 %v53
    %v69 = vunpack.c.l.b16 %v54
    %v70 = vpack.c.b16 %v67, %v66
    %v71 = vpack.c.b16 %v69, %v68
    %vm74 = vcmask 261120
    %v76 = vsel %vm74, %v50, 0
    %78 = vmatprep.subr.bf16.mxu0 0
    %79 = vmatpush1.bf16.msra.mxu0 0
    %80 = vmatprep.subr.bf16.mxu0 0
    %81 = vmatpush1.bf16.msra.mxu0 0
    %82 = vmatprep.subr.bf16.mxu0 0
    %83 = vmatpush1.bf16.msra.mxu0 0
    %84 = vmatprep.subr.bf16.mxu0 0
    %85 = vmatpush1.bf16.msra.mxu0 0
    %86 = vmatprep.subr.bf16.mxu0 0
    %87 = vmatpush1.bf16.msra.mxu0 0
    %88 = vmatprep.subr.bf16.mxu0 0
    %89 = vmatpush1.bf16.msra.mxu0 0
    %90 = vmatprep.subr.bf16.mxu0 0
    %91 = vmatpush1.bf16.msra.mxu0 %v71
    %92 = vmatprep.subr.bf16.mxu0 0
    %93 = vmatpush1.bf16.msra.mxu0 %v70
    %94 = vmatprep.subr.bf16.mxu0 0
    %95 = vmatpush2.bf16.msra.mxu0 0
    %96 = vmatprep.subr.bf16.mxu0 0
    %97 = vmatpush2.bf16.msra.mxu0 0
    %98 = vmatprep.subr.bf16.mxu0 0
    %99 = vmatpush2.bf16.msra.mxu0 0
    %100 = vmatprep.subr.bf16.mxu0 0
    %101 = vmatpush2.bf16.msra.mxu0 0
    %102 = vmatprep.subr.bf16.mxu0 0
    %103 = vmatpush2.bf16.msra.mxu0 0
    %104 = vmatprep.subr.bf16.mxu0 0
    %105 = vmatpush2.bf16.msra.mxu0 0
    %106 = vmatprep.subr.bf16.mxu0 0
    %107 = vmatpush2.bf16.msra.mxu0 0
    %108 = vmatprep.subr.bf16.mxu0 0
    %109 = vmatpush2.bf16.msra.mxu0 0
    %110 = vmatprep.mubr.bf16.mxu0 0
    %111 = vmatmul.mubr.bf16.gmra.mxu0 %v76
    %v112 = vpop.f32.mrf.mxu0
    %v113 = vadd.f32 %v60, %v112
    %v114 = vpop.f32.mrf.mxu0
    %v115 = vpop.f32.mrf.mxu0
    %v116 = vadd.f32 %v60, %v115
    %v117 = vpop.f32.mrf.mxu0
    %118 = vdwg.mxu0
    %v119 = vpack.c.bf16 %v116, %v113
    %v121 = vunpack.c.l.b16 %v119
    %v122 = vunpack.c.h.b16 %v119
    %v123 = vpack.c.b16 %v121, %v121
    %v124 = vpack.c.b16 %v122, %v122
    %vm127 = vcmask 257024
    %128 = vst.msk [vmem:[#allocation7] sm:$0xf] %vm127, %v123
    %129 = vst.msk [vmem:[#allocation7 + $0x4] sm:$0xf] %vm127, %v124
    %130 = vrot.lane.b32.xlu0 %v123, 96
    %v131 = vpop.permute.xlu0 %130
    %132 = vrot.lane.b32.xlu0 %v124, 96
    %v133 = vpop.permute.xlu0 %132
    %136 = vst.msk [vmem:[#allocation8] sm:$0xf] %vm127, %v131
    %137 = vst.msk [vmem:[#allocation8 + $0x4] sm:$0xf] %vm127, %v133
    %138 = vrot.lane.b32.xlu0 %v123, 64
    %v139 = vpop.permute.xlu0 %138
    %140 = vrot.lane.b32.xlu0 %v124, 64
    %v141 = vpop.permute.xlu0 %140
    %144 = vst.msk [vmem:[#allocation10] sm:$0xf] %vm127, %v139
    %145 = vst.msk [vmem:[#allocation10 + $0x4] sm:$0xf] %vm127, %v141
    // Predicated region
    $region22: #{tpu_custom_call.1} parent=1 // pred_check
      _
    $region23: #{tpu_custom_call.1} parent=1 // pred_check_branch
      %147 = sbr.rel (0) target = $region25
    $region24: #{tpu_custom_call.1} parent=1 // pred_region
      %s149 = ssub.s32 128, 128
      %150 = vsyncadd [#allocation4], %s149
      %s151 = sshll.u32 [#allocation7], 4
      %s152 = int_to_ptr.vmem [resolvable:$true] %s151
      %157 = dma.vmem_to_hbm [thread:$0]  %s152, 128, %s3, [#allocation4], 64, 64, 4
    $region25: #{tpu_custom_call.1} parent=1 // pred_fallthru
      _
    // Predicated region
    $region26: #{tpu_custom_call.1} parent=1 // pred_check
      _
    $region27: #{tpu_custom_call.1} parent=1 // pred_check_branch
      %159 = sbr.rel (0) target = $region29
    $region28: #{tpu_custom_call.1} parent=1 // pred_region
      %s161 = ssub.s32 128, 128
      %162 = vsyncadd [#allocation9], %s161
      %s163 = sshll.u32 [#allocation8], 4
      %s164 = int_to_ptr.vmem [resolvable:$true] %s163
      %169 = dma.vmem_to_hbm [thread:$0]  %s164, 128, %s4, [#allocation9], 64, 64, 4
    $region29: #{tpu_custom_call.1} parent=1 // pred_fallthru
      _
    // Predicated region
    $region30: #{tpu_custom_call.1} parent=1 // pred_check
      _
    $region31: #{tpu_custom_call.1} parent=1 // pred_check_branch
      %171 = sbr.rel (0) target = $region33
    $region32: #{tpu_custom_call.1} parent=1 // pred_region
      %s173 = ssub.s32 128, 128
      %174 = vsyncadd [#allocation9], %s173
      %s175 = sshll.u32 [#allocation10], 4
      %s176 = int_to_ptr.vmem [resolvable:$true] %s175
      %181 = dma.vmem_to_hbm [thread:$0]  %s176, 128, %s5, [#allocation9], 64, 64, 4
    $region33: #{tpu_custom_call.1} parent=1 // pred_fallthru
      _
    // Predicated region
    $region34: #{tpu_custom_call.1} parent=1 // pred_check
      _
    $region35: #{tpu_custom_call.1} parent=1 // pred_check_branch
      %183 = sbr.rel (0) target = $region37
    $region36: #{tpu_custom_call.1} parent=1 // pred_region
      %184 = dma.done [#allocation4], 128
    $region37: #{tpu_custom_call.1} parent=1 // pred_fallthru
      _
    // Predicated region
    $region38: #{tpu_custom_call.1} parent=1 // pred_check
      _
    $region39: #{tpu_custom_call.1} parent=1 // pred_check_branch
      %186 = sbr.rel (0) target = $region41
    $region40: #{tpu_custom_call.1} parent=1 // pred_region
      %187 = dma.done [#allocation9], 128
    $region41: #{tpu_custom_call.1} parent=1 // pred_fallthru
      _
    // Predicated region
    $region42: #{tpu_custom_call.1} parent=1 // pred_check
      _
    $region43: #{tpu_custom_call.1} parent=1 // pred_check_branch
      %189 = sbr.rel (0) target = $region45
    $region44: #{tpu_custom_call.1} parent=1 // pred_region
      %190 = dma.done [#allocation9], 128
    $region45: #{tpu_custom_call.1} parent=1 // pred_fallthru
      _
    %191 = vsyncpa [#allocation3], 1
    %192 = vsyncpa [#allocation6], 1
    %193 = vsyncpa [#allocation4], 1
    %194 = vsyncpa [#allocation9], 1

</llo_original>
